<compile_context>
chip_gen: v5e
topology: v5e:2x2
jax: 0.10.0
libtpu: 0.0.40
codegen_flags: <defaults>
</compile_context>

<pallas_src>
import functools

import jax
import jax.numpy as jnp
from jax.experimental import pallas as pl
from jax.experimental.pallas import tpu as pltpu


# ---------------------------------------------------------------------------
# Kernels
# ---------------------------------------------------------------------------

def _mlp_kernel(x_ref, w1_ref, b1_ref, w2_ref, b2_ref, out_ref, *, normalize):
  """One batch tile of  Linear -> ReLU -> Linear  (optionally L2-normalized rows).

  x_ref  : [TB, F]   native dtype (cast once to the MXU operand dtype)
  w1_ref : [F,  H]   param dtype (f32 or bf16)
  b1_ref : [1,  H]   f32
  w2_ref : [H,  O]
  b2_ref : [1,  O]
  out_ref: [TB, O]   f32 or bf16
  """
  wd = w1_ref.dtype                                    # MXU operand dtype
  x = x_ref[...].astype(wd)                            # single cast of the obs tile

  h = jnp.dot(x, w1_ref[...], preferred_element_type=jnp.float32)
  h = jnp.maximum(h + b1_ref[...].astype(jnp.float32), 0.0)

  y = jnp.dot(h.astype(wd), w2_ref[...], preferred_element_type=jnp.float32)
  y = y + b2_ref[...].astype(jnp.float32)

  if normalize:
    # goal / torch.norm(goal, p=2, dim=1, keepdim=True)  (no eps, matches torch)
    ss = jnp.sum(y * y, axis=-1, keepdims=True)
    y = y * jax.lax.rsqrt(ss)                          # EUP slot, not VALU divide

  out_ref[...] = y.astype(out_ref.dtype)


def _q_kernel(x_ref, wq_ref, bq_ref, out_ref):
  """q[0, j] = sum_f x[j, f] * w[0, f] + b   -> lane-dense (1, TB) output."""
  x = x_ref[...].astype(wq_ref.dtype)                  # [TB, F]
  # trans-B dot: (1,F) x (TB,F) contracted on F -> (1, TB); batch on the lane axis.
  q = jax.lax.dot_general(wq_ref[...], x, (((1,), (1,)), ((), ())),
                          preferred_element_type=jnp.float32)
  out_ref[...] = (q + bq_ref[...].astype(jnp.float32)).astype(out_ref.dtype)


def _fused_kernel(x_ref, dw1_ref, db1_ref, dw2_ref, db2_ref,
                  gw1_ref, gb1_ref, gw2_ref, gb2_ref, qw_ref, qb_ref,
                  dsr_ref, goal_ref, q_ref):
  """dsr + goal + q heads sharing a single obs tile DMA / cast."""
  wd = dw1_ref.dtype
  x = x_ref[...].astype(wd)

  # dsr head
  dh = jnp.dot(x, dw1_ref[...], preferred_element_type=jnp.float32)
  dh = jnp.maximum(dh + db1_ref[...].astype(jnp.float32), 0.0)
  d = jnp.dot(dh.astype(wd), dw2_ref[...], preferred_element_type=jnp.float32)
  dsr_ref[...] = (d + db2_ref[...].astype(jnp.float32)).astype(dsr_ref.dtype)

  # goal head (L2-normalized)
  gh = jnp.dot(x.astype(gw1_ref.dtype), gw1_ref[...],
               preferred_element_type=jnp.float32)
  gh = jnp.maximum(gh + gb1_ref[...].astype(jnp.float32), 0.0)
  g = jnp.dot(gh.astype(gw2_ref.dtype), gw2_ref[...],
              preferred_element_type=jnp.float32)
  g = g + gb2_ref[...].astype(jnp.float32)
  g = g * jax.lax.rsqrt(jnp.sum(g * g, axis=-1, keepdims=True))
  goal_ref[...] = g.astype(goal_ref.dtype)

  # q head (tiny; narrow store is fine here because the call is already fused)
  q = jnp.sum(x.astype(jnp.float32) * qw_ref[...].astype(jnp.float32),
              axis=-1, keepdims=True)
  q_ref[...] = (q + qb_ref[...].astype(jnp.float32)).astype(q_ref.dtype)


# ---------------------------------------------------------------------------
# Tiling helpers
# ---------------------------------------------------------------------------

def _cdiv(a, b):
  return (a + b - 1) // b


def _round_up(x, m):
  return ((x + m - 1) // m) * m


def _sublane(dtype):
  """Sublane packing multiple: 8 for 4-byte, 16 for 2-byte, 32 for 1-byte."""
  return max(8, 32 // jnp.dtype(dtype).itemsize)


def _choose_tile_b(batch, multiple):
  """Large mem-bound-friendly tiles; >=2 grid steps when batch >= 128 (v7x 2 TCs)."""
  if batch < 128:
    return batch                      # single block == full batch dim (always legal)
  cap = 1024 if batch >= 4096 else 512
  if batch <= 2 * cap:
    return _round_up(_cdiv(batch, 2), multiple)
  return _round_up(cap, multiple)


# ---------------------------------------------------------------------------
# Wrappers
# ---------------------------------------------------------------------------

def _run_mlp(x, w1, b1, w2, b2, *, normalize, tile_b, out_dtype):
  b, f = x.shape
  h = w1.shape[1]
  o = w2.shape[1]
  grid = (_cdiv(b, tile_b),)
  return pl.pallas_call(
      functools.partial(_mlp_kernel, normalize=normalize),
      out_shape=jax.ShapeDtypeStruct((b, o), out_dtype),
      grid_spec=pltpu.PrefetchScalarGridSpec(
          num_scalar_prefetch=0,
          grid=grid,
          in_specs=[
              pl.BlockSpec((tile_b, f), lambda i: (i, 0)),   # obs tile (native dtype)
              pl.BlockSpec((f, h), lambda i: (0, 0)),        # W1 (resident)
              pl.BlockSpec((1, h), lambda i: (0, 0)),        # b1
              pl.BlockSpec((h, o), lambda i: (0, 0)),        # W2
              pl.BlockSpec((1, o), lambda i: (0, 0)),        # b2
          ],
          out_specs=pl.BlockSpec((tile_b, o), lambda i: (i, 0)),
      ),
      compiler_params=pltpu.CompilerParams(
          dimension_semantics=("parallel",)),
  )(x, w1, b1.reshape(1, h), w2, b2.reshape(1, o))


def grid_goal_model(observation, params, mode="encode", *, tile_b=None,
                    out_dtype=jnp.float32):
  """Forward pass of GridGoalModel.  observation: [B, F] (any real dtype)."""
  assert observation.ndim == 2, "wrapper handles [B, feature_size] inputs"
  batch, f = observation.shape

  if mode in ("encode", "reconstruct"):
    # observation.type(torch.float): pure dtype cast, no kernel needed.
    return observation.astype(jnp.float32)

  if mode in ("goal", "dsr"):
    m = max(_sublane(observation.dtype), _sublane(out_dtype))
    if tile_b is None:
      tile_b = _choose_tile_b(batch, m)
    if mode == "goal":
      return _run_mlp(observation, params["goal_w1"], params["goal_b1"],
                      params["goal_w2"], params["goal_b2"],
                      normalize=True, tile_b=tile_b, out_dtype=out_dtype)
    a = params["output_size"]
    out = _run_mlp(observation, params["dsr_w1"], params["dsr_b1"],
                   params["dsr_w2"], params["dsr_b2"],
                   normalize=False, tile_b=tile_b, out_dtype=out_dtype)
    return out.reshape(batch, a, f)                   # dsr.reshape(-1, A, F)

  if mode == "q":
    # Lane-dense output: batch lives on the lane axis of a (1, N) array.
    if batch < 256:
      tq, nq = batch, 1                               # single block == array dims
    else:
      nq = max(2, _cdiv(batch, 512))                  # >=2 steps for v7x 2 TCs
      tq = _round_up(_cdiv(batch, nq), 128)
      nq = _cdiv(batch, tq)
    wq_t = params["q_w"].reshape(1, f)                # [1, F] lane-dense weight row
    bq = params["q_b"].reshape(1, 1)
    out = pl.pallas_call(
        _q_kernel,
        out_shape=jax.ShapeDtypeStruct((1, nq * tq), jnp.float32),
        grid_spec=pltpu.PrefetchScalarGridSpec(
            num_scalar_prefetch=0,
            grid=(nq,),
            in_specs=[
                pl.BlockSpec((tq, f), lambda i: (i, 0)),
                pl.BlockSpec((1, f), lambda i: (0, 0)),
                pl.BlockSpec((1, 1), lambda i: (0, 0)),
            ],
            out_specs=pl.BlockSpec((1, tq), lambda i: (0, i)),
        ),
        compiler_params=pltpu.CompilerParams(
            dimension_semantics=("parallel",)),
    )(observation, wq_t, bq)
    # TODO(synk): torch's .squeeze(2) implies [T, B, F] inputs; with the 2-D
    # wrapper this is the equivalent squeeze of the trailing size-1 dim.
    return out[0, :batch]                             # [B]

  raise ValueError("Invalid mode!")


def grid_goal_model_all(observation, params, *, tile_b=None,
                        out_dtype=jnp.float32):
  """Fused dsr + goal + q (common in DSR training): one obs DMA, one call."""
  assert observation.ndim == 2
  batch, f = observation.shape
  a = params["output_size"]
  m = max(_sublane(observation.dtype), _sublane(out_dtype))
  if tile_b is None:
    tile_b = _choose_tile_b(batch, m)
  h_d = params["dsr_w1"].shape[1]
  h_g = params["goal_w1"].shape[1]
  o_d = params["dsr_w2"].shape[1]
  grid = (_cdiv(batch, tile_b),)
  dsr, goal, q = pl.pallas_call(
      _fused_kernel,
      out_shape=(jax.ShapeDtypeStruct((batch, o_d), out_dtype),
                 jax.ShapeDtypeStruct((batch, f), out_dtype),
                 jax.ShapeDtypeStruct((batch, 1), jnp.float32)),
      grid_spec=pltpu.PrefetchScalarGridSpec(
          num_scalar_prefetch=0,
          grid=grid,
          in_specs=[
              pl.BlockSpec((tile_b, f), lambda i: (i, 0)),   # obs
              pl.BlockSpec((f, h_d), lambda i: (0, 0)),      # dsr W1
              pl.BlockSpec((1, h_d), lambda i: (0, 0)),      # dsr b1
              pl.BlockSpec((h_d, o_d), lambda i: (0, 0)),    # dsr W2
              pl.BlockSpec((1, o_d), lambda i: (0, 0)),      # dsr b2
              pl.BlockSpec((f, h_g), lambda i: (0, 0)),      # goal W1
              pl.BlockSpec((1, h_g), lambda i: (0, 0)),      # goal b1
              pl.BlockSpec((h_g, f), lambda i: (0, 0)),      # goal W2
              pl.BlockSpec((1, f), lambda i: (0, 0)),        # goal b2
              pl.BlockSpec((1, f), lambda i: (0, 0)),        # q W (row)
              pl.BlockSpec((1, 1), lambda i: (0, 0)),        # q b
          ],
          out_specs=(pl.BlockSpec((tile_b, o_d), lambda i: (i, 0)),
                     pl.BlockSpec((tile_b, f), lambda i: (i, 0)),
                     pl.BlockSpec((tile_b, 1), lambda i: (i, 0))),
      ),
      compiler_params=pltpu.CompilerParams(
          dimension_semantics=("parallel",)),
  )(observation,
    params["dsr_w1"], params["dsr_b1"].reshape(1, h_d),
    params["dsr_w2"], params["dsr_b2"].reshape(1, o_d),
    params["goal_w1"], params["goal_b1"].reshape(1, h_g),
    params["goal_w2"], params["goal_b2"].reshape(1, f),
    params["q_w"].reshape(1, f), params["q_b"].reshape(1, 1))
  return dsr.reshape(batch, a, f), goal, q[:, 0]


# ---------------------------------------------------------------------------
# Params + pure-JAX reference
# ---------------------------------------------------------------------------

def init_params(key, feature_size, output_size, dsr_hidden, goal_hidden,
                param_dtype=jnp.float32):
  """torch.nn.Linear default init (U[-1/sqrt(fan_in), 1/sqrt(fan_in)])."""
  def linear(k, fan_in, fan_out):
    kw, kb = jax.random.split(k)
    lim = 1.0 / jnp.sqrt(jnp.float32(fan_in))
    w = jax.random.uniform(kw, (fan_in, fan_out), jnp.float32, -lim, lim)
    b = jax.random.uniform(kb, (fan_out,), jnp.float32, -lim, lim)
    return w.astype(param_dtype), b.astype(jnp.float32)

  k = jax.random.split(key, 5)
  dw1, db1 = linear(k[0], feature_size, dsr_hidden)
  dw2, db2 = linear(k[1], dsr_hidden, output_size * feature_size)
  gw1, gb1 = linear(k[2], feature_size, goal_hidden)
  gw2, gb2 = linear(k[3], goal_hidden, feature_size)
  qw, qb = linear(k[4], feature_size, 1)
  return {
      "dsr_w1": dw1, "dsr_b1": db1, "dsr_w2": dw2, "dsr_b2": db2,
      "goal_w1": gw1, "goal_b1": gb1, "goal_w2": gw2, "goal_b2": gb2,
      "q_w": qw.astype(jnp.float32), "q_b": qb,
      "output_size": output_size,
  }


def reference_forward(observation, params, mode):
  x = observation.astype(jnp.float32)
  if mode in ("encode", "reconstruct"):
    return x
  if mode == "goal":
    h = jnp.maximum(x @ params["goal_w1"].astype(jnp.float32) + params["goal_b1"], 0.0)
    g = h @ params["goal_w2"].astype(jnp.float32) + params["goal_b2"]
    return g / jnp.linalg.norm(g, axis=1, keepdims=True)
  if mode == "dsr":
    h = jnp.maximum(x @ params["dsr_w1"].astype(jnp.float32) + params["dsr_b1"], 0.0)
    d = h @ params["dsr_w2"].astype(jnp.float32) + params["dsr_b2"]
    return d.reshape(x.shape[0], params["output_size"], x.shape[1])
  if mode == "q":
    return (x @ params["q_w"] + params["q_b"])[:, 0]
  raise ValueError("Invalid mode!")


# ---------------------------------------------------------------------------
# Demo
# ---------------------------------------------------------------------------

if __name__ == "__main__":
  FEATURE = 128    # feature_size = image_shape[0]
  ACTIONS = 8      # output_size
  HIDDEN = 128     # dsr/goal fc_sizes[0]

  key = jax.random.PRNGKey(0)
  kp, ko = jax.random.split(key)
  params = init_params(kp, FEATURE, ACTIONS, HIDDEN, HIDDEN, param_dtype=jnp.float32)
  params_bf16 = init_params(kp, FEATURE, ACTIONS, HIDDEN, HIDDEN,
                            param_dtype=jnp.bfloat16)   # production path v6e/v7x

  failures = []

  def check(name, out, ref, atol, rtol):
    out = jax.block_until_ready(out)
    if out.shape != ref.shape:
      failures.append(f"{name}: shape {out.shape} vs {ref.shape}")
      return
    o = jnp.asarray(out, jnp.float32)
    if not jnp.allclose(o, ref, atol=atol, rtol=rtol):
      err = float(jnp.max(jnp.abs(o - ref)))
      failures.append(f"{name}: max abs err {err:.3e}")

  # B=100: single exact tile; B=300: 2-tile grid with a ragged last block.
  for B in (100, 300):
    obs = jax.random.normal(jax.random.fold_in(ko, B), (B, FEATURE), jnp.float32)

    check(f"encode[B={B}]", grid_goal_model(obs, params, "encode"),
          reference_forward(obs, params, "encode"), 0.0, 0.0)
    check(f"goal[B={B}]", grid_goal_model(obs, params, "goal"),
          reference_forward(obs, params, "goal"), 5e-4, 5e-4)
    check(f"dsr[B={B}]", grid_goal_model(obs, params, "dsr"),
          reference_forward(obs, params, "dsr"), 5e-4, 5e-4)
    check(f"q[B={B}]", grid_goal_model(obs, params, "q"),
          reference_forward(obs, params, "q"), 5e-4, 5e-4)

    # bf16 output halves the dominant dsr writeback stream.
    check(f"dsr_bf16out[B={B}]",
          grid_goal_model(obs, params, "dsr", out_dtype=jnp.bfloat16),
          reference_forward(obs, params, "dsr"), 2e-2, 2e-2)

    # bf16 weights (f32 accumulation preserved) — production MXU path.
    check(f"goal_bf16w[B={B}]", grid_goal_model(obs, params_bf16, "goal"),
          reference_forward(obs, params_bf16, "goal"), 5e-2, 5e-2)
    check(f"dsr_bf16w[B={B}]", grid_goal_model(obs, params_bf16, "dsr"),
          reference_forward(obs, params_bf16, "dsr"), 5e-2, 5e-2)

    # fused dsr + goal + q sharing one obs DMA.
    d_f, g_f, q_f = grid_goal_model_all(obs, params)
    check(f"fused_dsr[B={B}]", d_f, reference_forward(obs, params, "dsr"), 5e-4, 5e-4)
    check(f"fused_goal[B={B}]", g_f, reference_forward(obs, params, "goal"), 5e-4, 5e-4)
    check(f"fused_q[B={B}]", q_f, reference_forward(obs, params, "q"), 5e-4, 5e-4)

  for msg in failures:
    print("MISMATCH:", msg)
  assert not failures, "mismatch vs reference"
  print("KERNEL_OK")
</pallas_src>

<mosaic_0001>
module attributes {stable_mosaic.version = 11 : i64} {
  func.func @_mlp_kernel(%arg0: i32, %arg1: memref<100x128xf32, #tpu.memory_space<vmem>>, %arg2: memref<128x128xf32, #tpu.memory_space<vmem>>, %arg3: memref<1x128xf32, #tpu.memory_space<vmem>>, %arg4: memref<128x128xf32, #tpu.memory_space<vmem>>, %arg5: memref<1x128xf32, #tpu.memory_space<vmem>>, %arg6: memref<100x128xf32, #tpu.memory_space<vmem>>) attributes {dimension_semantics = [#tpu.dimension_semantics<parallel>], iteration_bounds = array<i64: 1>, scalar_prefetch = 0 : i64, scratch_operands = 0 : i64, tpu.core_type = #tpu.core_type<tc>, window_params = [{transform_indices = @transform_0, window_bounds = array<i64: 100, 128>}, {pipeline_mode = #tpu.pipeline_mode<synchronous>, transform_indices = @transform_1, window_bounds = array<i64: 128, 128>}, {pipeline_mode = #tpu.pipeline_mode<synchronous>, transform_indices = @transform_2, window_bounds = array<i64: 1, 128>}, {pipeline_mode = #tpu.pipeline_mode<synchronous>, transform_indices = @transform_3, window_bounds = array<i64: 128, 128>}, {pipeline_mode = #tpu.pipeline_mode<synchronous>, transform_indices = @transform_4, window_bounds = array<i64: 1, 128>}, {transform_indices = @transform_5, window_bounds = array<i64: 100, 128>}]} {
    %c0 = arith.constant 0 : index
    %c0_0 = arith.constant 0 : index
    %0 = vector.load %arg1[%c0, %c0_0] : memref<100x128xf32, #tpu.memory_space<vmem>>, vector<100x128xf32>
    %c0_1 = arith.constant 0 : index
    %c0_2 = arith.constant 0 : index
    %1 = vector.load %arg2[%c0_1, %c0_2] : memref<128x128xf32, #tpu.memory_space<vmem>>, vector<128x128xf32>
    %cst = arith.constant dense<0.000000e+00> : vector<100x128xf32>
    %2 = tpu.matmul %0, %1, %cst {dimension_numbers = #tpu.dot_dimension_numbers<[1], [0], [0], [1], [0, 0, 1, 1], [], []>} : vector<100x128xf32>, vector<128x128xf32>, vector<100x128xf32> -> vector<100x128xf32>
    %c0_3 = arith.constant 0 : index
    %c0_4 = arith.constant 0 : index
    %3 = vector.load %arg3[%c0_3, %c0_4] : memref<1x128xf32, #tpu.memory_space<vmem>>, vector<1x128xf32>
    %4 = vector.broadcast %3 : vector<1x128xf32> to vector<100x128xf32>
    %5 = arith.addf %2, %4 : vector<100x128xf32>
    %cst_5 = arith.constant 0.000000e+00 : f32
    %6 = vector.broadcast %cst_5 : f32 to vector<100x128xf32>
    %7 = arith.maximumf %5, %6 : vector<100x128xf32>
    %c0_6 = arith.constant 0 : index
    %c0_7 = arith.constant 0 : index
    %8 = vector.load %arg4[%c0_6, %c0_7] : memref<128x128xf32, #tpu.memory_space<vmem>>, vector<128x128xf32>
    %cst_8 = arith.constant dense<0.000000e+00> : vector<100x128xf32>
    %9 = tpu.matmul %7, %8, %cst_8 {dimension_numbers = #tpu.dot_dimension_numbers<[1], [0], [0], [1], [0, 0, 1, 1], [], []>} : vector<100x128xf32>, vector<128x128xf32>, vector<100x128xf32> -> vector<100x128xf32>
    %c0_9 = arith.constant 0 : index
    %c0_10 = arith.constant 0 : index
    %10 = vector.load %arg5[%c0_9, %c0_10] : memref<1x128xf32, #tpu.memory_space<vmem>>, vector<1x128xf32>
    %11 = vector.broadcast %10 : vector<1x128xf32> to vector<100x128xf32>
    %12 = arith.addf %9, %11 : vector<100x128xf32>
    %13 = arith.mulf %12, %12 : vector<100x128xf32>
    %cst_11 = arith.constant dense<0.000000e+00> : vector<100xf32>
    %14 = vector.multi_reduction <add>, %13, %cst_11 [1] : vector<100x128xf32> to vector<100xf32>
    %15 = vector.shape_cast %14 : vector<100xf32> to vector<100x1xf32>
    %16 = math.rsqrt %15 : vector<100x1xf32>
    %17 = vector.broadcast %16 : vector<100x1xf32> to vector<100x128xf32>
    %18 = arith.mulf %12, %17 : vector<100x128xf32>
    %c0_12 = arith.constant 0 : index
    %c0_13 = arith.constant 0 : index
    %19 = vector.load %arg6[%c0_12, %c0_13] : memref<100x128xf32, #tpu.memory_space<vmem>>, vector<100x128xf32>
    tpu.vector_store %arg6[%c0_12, %c0_13], %18 {strides = array<i32>} : memref<100x128xf32, #tpu.memory_space<vmem>>, vector<100x128xf32>,
    return
  }
  func.func @transform_0(%arg0: i32) -> (i32, i32) {
    %c0_i32 = arith.constant 0 : i32
    %c0_i32_0 = arith.constant 0 : i32
    return %arg0, %c0_i32 : i32, i32
  }
  func.func @transform_1(%arg0: i32) -> (i32, i32) {
    %c0_i32 = arith.constant 0 : i32
    %c0_i32_0 = arith.constant 0 : i32
    %c0_i32_1 = arith.constant 0 : i32
    return %c0_i32, %c0_i32_0 : i32, i32
  }
  func.func @transform_2(%arg0: i32) -> (i32, i32) {
    %c0_i32 = arith.constant 0 : i32
    %c0_i32_0 = arith.constant 0 : i32
    %c0_i32_1 = arith.constant 0 : i32
    return %c0_i32, %c0_i32_0 : i32, i32
  }
  func.func @transform_3(%arg0: i32) -> (i32, i32) {
    %c0_i32 = arith.constant 0 : i32
    %c0_i32_0 = arith.constant 0 : i32
    %c0_i32_1 = arith.constant 0 : i32
    return %c0_i32, %c0_i32_0 : i32, i32
  }
  func.func @transform_4(%arg0: i32) -> (i32, i32) {
    %c0_i32 = arith.constant 0 : i32
    %c0_i32_0 = arith.constant 0 : i32
    %c0_i32_1 = arith.constant 0 : i32
    return %c0_i32, %c0_i32_0 : i32, i32
  }
  func.func @transform_5(%arg0: i32) -> (i32, i32) {
    %c0_i32 = arith.constant 0 : i32
    %c0_i32_0 = arith.constant 0 : i32
    return %arg0, %c0_i32 : i32, i32
  }
}

</mosaic_0001>

<llo_original>
// kernel: tpu_custom_call.1
$region0: #{tpu_custom_call.1}
  #allocation0 [shape = 'u32[]', space=smem, size = 0x4, offset = 0x4, fixed_abs, tag = 'smem constant byte address 0x4 - core index']
  #allocation1 [shape = 'u32[72,128]{1,0:T(1,128)}', space=vmem, size = 0x9000, scoped, tag = 'internal scratch']
  %s0 = inlined_call_operand.hbm [shape: f32[100,128], index: 0, kind: input, shape index: {}]
  %s1 = inlined_call_operand.hbm [shape: f32[128,128], index: 1, kind: input, shape index: {}]
  %s2 = inlined_call_operand.vmem [shape: f32[1,128], index: 2, kind: input, shape index: {}]
  %s3 = inlined_call_operand.hbm [shape: f32[128,128], index: 3, kind: input, shape index: {}]
  %s4 = inlined_call_operand.vmem [shape: f32[1,128], index: 4, kind: input, shape index: {}]
  %s5 = inlined_call_operand.hbm [shape: f32[100,128], index: 5, kind: output, shape index: {}]
  %s6 = sld [smem:[#allocation0]]
  $region42: #{tpu_custom_call.1} parent=0
    _
  %s8 = ssub.s32 1, %s6
  %s9 = scalar_select 0, %s8, %s6
  $region1: #{tpu_custom_call.1} parent=0
    #allocation2 [shape = 'u8[53248]{0}', space=vmem, size = 0xd000, scoped, tag = 'input window, operand 0, single buffered']
    #allocation3 [shape = 's32[1]{0}', space=sflag, size = 0x4, scoped, tag = 'scoped memory for tpu_custom_call.1']
    #allocation4 [shape = 's32[1]{0}', space=sflag, size = 0x4, scoped, tag = 'scoped memory for tpu_custom_call.1']
    #allocation5 [shape = 'u8[65536]{0}', space=vmem, size = 0x10000, scoped, tag = 'input window, operand 1, single buffered']
    #allocation6 [shape = 's32[1]{0}', space=sflag, size = 0x4, scoped, tag = 'scoped memory for tpu_custom_call.1']
    #allocation7 [shape = 'u8[65536]{0}', space=vmem, size = 0x10000, scoped, tag = 'input window, operand 3, single buffered']
    #allocation8 [shape = 'u8[53248]{0}', space=vmem, size = 0xd000, scoped, tag = 'output window, operand 0, single buffered']
    %10 = vsyncpa [#allocation3], 0
    %11 = vsyncpa [#allocation6], 0
    %12 = vsyncpa [#allocation4], 0
    // Predicated region
    $region2: #{tpu_custom_call.1} parent=1 // pred_check
      _
    $region3: #{tpu_custom_call.1} parent=1 // pred_check_branch
      %14 = sbr.rel (0) target = $region5
    $region4: #{tpu_custom_call.1} parent=1 // pred_region
      %16 = vsyncadd [#allocation3], 0
      %s17 = sshll.u32 %s0, 4
      %s18 = int_to_ptr.hbm [resolvable:$true] %s17
      %s19 = sshll.u32 [#allocation2], 4
      %s20 = int_to_ptr.vmem [resolvable:$true] %s19
      %25 = dma.hbm_to_vmem [thread:$0]  %s18, 1664, %s20, [#allocation3], 128, 128, 8
    $region5: #{tpu_custom_call.1} parent=1 // pred_fallthru
      _
    // Predicated region
    $region6: #{tpu_custom_call.1} parent=1 // pred_check
      _
    $region7: #{tpu_custom_call.1} parent=1 // pred_check_branch
      %27 = sbr.rel (0) target = $region9
    $region8: #{tpu_custom_call.1} parent=1 // pred_region
      %29 = vsyncadd [#allocation6], 0
      %s30 = sshll.u32 %s1, 4
      %s31 = int_to_ptr.hbm [resolvable:$true] %s30
      %s32 = sshll.u32 [#allocation5], 4
      %s33 = int_to_ptr.vmem [resolvable:$true] %s32
      %38 = dma.hbm_to_vmem [thread:$0]  %s31, 2048, %s33, [#allocation6], 128, 128, 8
    $region9: #{tpu_custom_call.1} parent=1 // pred_fallthru
      _
    // Predicated region
    $region10: #{tpu_custom_call.1} parent=1 // pred_check
      _
    $region11: #{tpu_custom_call.1} parent=1 // pred_check_branch
      %40 = sbr.rel (0) target = $region13
    $region12: #{tpu_custom_call.1} parent=1 // pred_region
      _
    $region13: #{tpu_custom_call.1} parent=1 // pred_fallthru
      _
    // Predicated region
    $region14: #{tpu_custom_call.1} parent=1 // pred_check
      _
    $region15: #{tpu_custom_call.1} parent=1 // pred_check_branch
      %42 = sbr.rel (0) target = $region17
    $region16: #{tpu_custom_call.1} parent=1 // pred_region
      %44 = vsyncadd [#allocation6], 0
      %s45 = sshll.u32 %s3, 4
      %s46 = int_to_ptr.hbm [resolvable:$true] %s45
      %s47 = sshll.u32 [#allocation7], 4
      %s48 = int_to_ptr.vmem [resolvable:$true] %s47
      %53 = dma.hbm_to_vmem [thread:$0]  %s46, 2048, %s48, [#allocation6], 128, 128, 8
    $region17: #{tpu_custom_call.1} parent=1 // pred_fallthru
      _
    // Predicated region
    $region18: #{tpu_custom_call.1} parent=1 // pred_check
      _
    $region19: #{tpu_custom_call.1} parent=1 // pred_check_branch
      %55 = sbr.rel (0) target = $region21
    $region20: #{tpu_custom_call.1} parent=1 // pred_region
      _
    $region21: #{tpu_custom_call.1} parent=1 // pred_fallthru
      _
    // Predicated region
    $region22: #{tpu_custom_call.1} parent=1 // pred_check
      _
    $region23: #{tpu_custom_call.1} parent=1 // pred_check_branch
      %57 = sbr.rel (0) target = $region25
    $region24: #{tpu_custom_call.1} parent=1 // pred_region
      %59 = dma.done [#allocation3], 1664
    $region25: #{tpu_custom_call.1} parent=1 // pred_fallthru
      _
    // Predicated region
    $region26: #{tpu_custom_call.1} parent=1 // pred_check
      _
    $region27: #{tpu_custom_call.1} parent=1 // pred_check_branch
      %61 = sbr.rel (0) target = $region29
    $region28: #{tpu_custom_call.1} parent=1 // pred_region
      %63 = dma.done [#allocation6], 2048
    $region29: #{tpu_custom_call.1} parent=1 // pred_fallthru
      _
    // Predicated region
    $region30: #{tpu_custom_call.1} parent=1 // pred_check
      _
    $region31: #{tpu_custom_call.1} parent=1 // pred_check_branch
      %65 = sbr.rel (0) target = $region33
    $region32: #{tpu_custom_call.1} parent=1 // pred_region
      %67 = dma.done [#allocation6], 2048
    $region33: #{tpu_custom_call.1} parent=1 // pred_fallthru
      _
    %v68 = vld [vmem:[#allocation2] sm:$0xff]
    %v69 = vld [vmem:[#allocation2 + $0x8] sm:$0xff]
    %v70 = vld [vmem:[#allocation2 + $0x10] sm:$0xff]
    %v71 = vld [vmem:[#allocation2 + $0x18] sm:$0xff]
    %v72 = vld [vmem:[#allocation2 + $0x20] sm:$0xff]
    %v73 = vld [vmem:[#allocation2 + $0x28] sm:$0xff]
    %v74 = vld [vmem:[#allocation2 + $0x30] sm:$0xff]
    %v75 = vld [vmem:[#allocation2 + $0x38] sm:$0xff]
    %v76 = vld [vmem:[#allocation2 + $0x40] sm:$0xff]
    %v77 = vld [vmem:[#allocation2 + $0x48] sm:$0xff]
    %v78 = vld [vmem:[#allocation2 + $0x50] sm:$0xff]
    %v79 = vld [vmem:[#allocation2 + $0x58] sm:$0xff]
    %v80 = vld [vmem:[#allocation2 + $0x60] sm:$0xf]
    %v81 = vld [vmem:[#allocation5] sm:$0xff]
    %v82 = vld [vmem:[#allocation5 + $0x8] sm:$0xff]
    %v83 = vld [vmem:[#allocation5 + $0x10] sm:$0xff]
    %v84 = vld [vmem:[#allocation5 + $0x18] sm:$0xff]
    %v85 = vld [vmem:[#allocation5 + $0x20] sm:$0xff]
    %v86 = vld [vmem:[#allocation5 + $0x28] sm:$0xff]
    %v87 = vld [vmem:[#allocation5 + $0x30] sm:$0xff]
    %v88 = vld [vmem:[#allocation5 + $0x38] sm:$0xff]
    %v89 = vld [vmem:[#allocation5 + $0x40] sm:$0xff]
    %v90 = vld [vmem:[#allocation5 + $0x48] sm:$0xff]
    %v91 = vld [vmem:[#allocation5 + $0x50] sm:$0xff]
    %v92 = vld [vmem:[#allocation5 + $0x58] sm:$0xff]
    %v93 = vld [vmem:[#allocation5 + $0x60] sm:$0xff]
    %v94 = vld [vmem:[#allocation5 + $0x68] sm:$0xff]
    %v95 = vld [vmem:[#allocation5 + $0x70] sm:$0xff]
    %v96 = vld [vmem:[#allocation5 + $0x78] sm:$0xff]
    %v97 = vld [vmem:[%s2] sm:$0x1]
    %v99 = vperm.slane %v97, 0
    %101 = vmatpush.msra.mxu0 %v96
    %102 = vmatpush.msra.mxu0 %v95
    %103 = vmatpush.msra.mxu0 %v94
    %104 = vmatpush.msra.mxu0 %v93
    %105 = vmatpush.msra.mxu0 %v92
    %106 = vmatpush.msra.mxu0 %v91
    %107 = vmatpush.msra.mxu0 %v90
    %108 = vmatpush.msra.mxu0 %v89
    %109 = vmatpush.msra.mxu0 %v88
    %110 = vmatpush.msra.mxu0 %v87
    %111 = vmatpush.msra.mxu0 %v86
    %112 = vmatpush.msra.mxu0 %v85
    %113 = vmatpush.msra.mxu0 %v84
    %114 = vmatpush.msra.mxu0 %v83
    %115 = vmatpush.msra.mxu0 %v82
    %116 = vmatpush.msra.mxu0 %v81
    %117 = vmatmul.f32.gmra.mxu0 %v68
    %v118 = vpop.f32.mrf.mxu0
    %v119 = vadd.f32 %v99, %v118
    %120 = vmatmul.f32.gmra.mxu0 %v69
    %v121 = vpop.f32.mrf.mxu0
    %v122 = vadd.f32 %v99, %v121
    %123 = vmatmul.f32.gmra.mxu0 %v70
    %v124 = vpop.f32.mrf.mxu0
    %v125 = vadd.f32 %v99, %v124
    %126 = vmatmul.f32.gmra.mxu0 %v71
    %v127 = vpop.f32.mrf.mxu0
    %v128 = vadd.f32 %v99, %v127
    %129 = vmatmul.f32.gmra.mxu0 %v72
    %v130 = vpop.f32.mrf.mxu0
    %v131 = vadd.f32 %v99, %v130
    %132 = vmatmul.f32.gmra.mxu0 %v73
    %v133 = vpop.f32.mrf.mxu0
    %v134 = vadd.f32 %v99, %v133
    %135 = vmatmul.f32.gmra.mxu0 %v74
    %v136 = vpop.f32.mrf.mxu0
    %v137 = vadd.f32 %v99, %v136
    %138 = vmatmul.f32.gmra.mxu0 %v75
    %v139 = vpop.f32.mrf.mxu0
    %v140 = vadd.f32 %v99, %v139
    %141 = vmatmul.f32.gmra.mxu0 %v76
    %v142 = vpop.f32.mrf.mxu0
    %v143 = vadd.f32 %v99, %v142
    %144 = vmatmul.f32.gmra.mxu0 %v77
    %v145 = vpop.f32.mrf.mxu0
    %v146 = vadd.f32 %v99, %v145
    %147 = vmatmul.f32.gmra.mxu0 %v78
    %v148 = vpop.f32.mrf.mxu0
    %v149 = vadd.f32 %v99, %v148
    %150 = vmatmul.f32.gmra.mxu0 %v79
    %v151 = vpop.f32.mrf.mxu0
    %v152 = vadd.f32 %v99, %v151
    %153 = vmatmul.f32.gmra.mxu0 %v80
    %v154 = vpop.f32.mrf.mxu0
    %v155 = vadd.f32 %v99, %v154
    %156 = vdwg.mxu0
    %v157 = vmax.f32 %v119, 0.0
    %v158 = vmax.f32 %v122, 0.0
    %v159 = vmax.f32 %v125, 0.0
    %v160 = vmax.f32 %v128, 0.0
    %v161 = vmax.f32 %v131, 0.0
    %v162 = vmax.f32 %v134, 0.0
    %v163 = vmax.f32 %v137, 0.0
    %v164 = vmax.f32 %v140, 0.0
    %v165 = vmax.f32 %v143, 0.0
    %v166 = vmax.f32 %v146, 0.0
    %v167 = vmax.f32 %v149, 0.0
    %v168 = vmax.f32 %v152, 0.0
    %v169 = vmax.f32 %v155, 0.0
    %v170 = vld [vmem:[#allocation7] sm:$0xff]
    %v171 = vld [vmem:[#allocation7 + $0x8] sm:$0xff]
    %v172 = vld [vmem:[#allocation7 + $0x10] sm:$0xff]
    %v173 = vld [vmem:[#allocation7 + $0x18] sm:$0xff]
    %v174 = vld [vmem:[#allocation7 + $0x20] sm:$0xff]
    %v175 = vld [vmem:[#allocation7 + $0x28] sm:$0xff]
    %v176 = vld [vmem:[#allocation7 + $0x30] sm:$0xff]
    %v177 = vld [vmem:[#allocation7 + $0x38] sm:$0xff]
    %v178 = vld [vmem:[#allocation7 + $0x40] sm:$0xff]
    %v179 = vld [vmem:[#allocation7 + $0x48] sm:$0xff]
    %v180 = vld [vmem:[#allocation7 + $0x50] sm:$0xff]
    %v181 = vld [vmem:[#allocation7 + $0x58] sm:$0xff]
    %v182 = vld [vmem:[#allocation7 + $0x60] sm:$0xff]
    %v183 = vld [vmem:[#allocation7 + $0x68] sm:$0xff]
    %v184 = vld [vmem:[#allocation7 + $0x70] sm:$0xff]
    %v185 = vld [vmem:[#allocation7 + $0x78] sm:$0xff]
    %v186 = vld [vmem:[%s4] sm:$0x1]
    %v188 = vperm.slane %v186, 0
    %190 = vmatpush.msra.mxu0 %v185
    %191 = vmatpush.msra.mxu0 %v184
    %192 = vmatpush.msra.mxu0 %v183
    %193 = vmatpush.msra.mxu0 %v182
    %194 = vmatpush.msra.mxu0 %v181
    %195 = vmatpush.msra.mxu0 %v180
    %196 = vmatpush.msra.mxu0 %v179
    %197 = vmatpush.msra.mxu0 %v178
    %198 = vmatpush.msra.mxu0 %v177
    %199 = vmatpush.msra.mxu0 %v176
    %200 = vmatpush.msra.mxu0 %v175
    %201 = vmatpush.msra.mxu0 %v174
    %202 = vmatpush.msra.mxu0 %v173
    %203 = vmatpush.msra.mxu0 %v172
    %204 = vmatpush.msra.mxu0 %v171
    %205 = vmatpush.msra.mxu0 %v170
    %206 = vmatmul.f32.gmra.mxu0 %v157
    %v207 = vpop.f32.mrf.mxu0
    %v208 = vadd.f32 %v188, %v207
    %209 = vmatmul.f32.gmra.mxu0 %v158
    %v210 = vpop.f32.mrf.mxu0
    %v211 = vadd.f32 %v188, %v210
    %212 = vmatmul.f32.gmra.mxu0 %v159
    %v213 = vpop.f32.mrf.mxu0
    %v214 = vadd.f32 %v188, %v213
    %215 = vmatmul.f32.gmra.mxu0 %v160
    %v216 = vpop.f32.mrf.mxu0
    %v217 = vadd.f32 %v188, %v216
    %218 = vmatmul.f32.gmra.mxu0 %v161
    %v219 = vpop.f32.mrf.mxu0
    %v220 = vadd.f32 %v188, %v219
    %221 = vmatmul.f32.gmra.mxu0 %v162
    %v222 = vpop.f32.mrf.mxu0
    %v223 = vadd.f32 %v188, %v222
    %224 = vmatmul.f32.gmra.mxu0 %v163
    %v225 = vpop.f32.mrf.mxu0
    %v226 = vadd.f32 %v188, %v225
    %227 = vmatmul.f32.gmra.mxu0 %v164
    %v228 = vpop.f32.mrf.mxu0
    %v229 = vadd.f32 %v188, %v228
    %230 = vmatmul.f32.gmra.mxu0 %v165
    %v231 = vpop.f32.mrf.mxu0
    %v232 = vadd.f32 %v188, %v231
    %233 = vmatmul.f32.gmra.mxu0 %v166
    %v234 = vpop.f32.mrf.mxu0
    %v235 = vadd.f32 %v188, %v234
    %236 = vmatmul.f32.gmra.mxu0 %v167
    %v237 = vpop.f32.mrf.mxu0
    %v238 = vadd.f32 %v188, %v237
    %239 = vmatmul.f32.gmra.mxu0 %v168
    %v240 = vpop.f32.mrf.mxu0
    %v241 = vadd.f32 %v188, %v240
    %242 = vmatmul.f32.gmra.mxu0 %v169
    %v243 = vpop.f32.mrf.mxu0
    %v244 = vadd.f32 %v188, %v243
    %245 = vdwg.mxu0
    %v246 = vmul.f32 %v208, %v208
    %v247 = vmul.f32 %v211, %v211
    %v248 = vmul.f32 %v214, %v214
    %v249 = vmul.f32 %v217, %v217
    %v250 = vmul.f32 %v220, %v220
    %v251 = vmul.f32 %v223, %v223
    %v252 = vmul.f32 %v226, %v226
    %v253 = vmul.f32 %v229, %v229
    %v254 = vmul.f32 %v232, %v232
    %v255 = vmul.f32 %v235, %v235
    %v256 = vmul.f32 %v238, %v238
    %v257 = vmul.f32 %v241, %v241
    %v258 = vmul.f32 %v244, %v244
    %259 = vadd.xlane.f32.xlu0 %v246
    %v260 = vpop.xlane.xlu0 %259
    %261 = vadd.xlane.f32.xlu0 %v247
    %v262 = vpop.xlane.xlu0 %261
    %263 = vadd.xlane.f32.xlu0 %v248
    %v264 = vpop.xlane.xlu0 %263
    %265 = vadd.xlane.f32.xlu0 %v249
    %v266 = vpop.xlane.xlu0 %265
    %267 = vadd.xlane.f32.xlu0 %v250
    %v268 = vpop.xlane.xlu0 %267
    %269 = vadd.xlane.f32.xlu0 %v251
    %v270 = vpop.xlane.xlu0 %269
    %271 = vadd.xlane.f32.xlu0 %v252
    %v272 = vpop.xlane.xlu0 %271
    %273 = vadd.xlane.f32.xlu0 %v253
    %v274 = vpop.xlane.xlu0 %273
    %275 = vadd.xlane.f32.xlu0 %v254
    %v276 = vpop.xlane.xlu0 %275
    %277 = vadd.xlane.f32.xlu0 %v255
    %v278 = vpop.xlane.xlu0 %277
    %279 = vadd.xlane.f32.xlu0 %v256
    %v280 = vpop.xlane.xlu0 %279
    %281 = vadd.xlane.f32.xlu0 %v257
    %v282 = vpop.xlane.xlu0 %281
    %vm283 = vcmask 1043456
    %v284 = vsel %vm283, %v258, 0.0
    %285 = vadd.xlane.f32.xlu0 %v284
    %v286 = vpop.xlane.xlu0 %285
    %v287 = vrsqrt.pop %v260
    %v288 = vmul.f32 %v287, %v260
    %v289 = vmul.f32 %v288, %v287
    %v290 = vmul.f32 0.5, %v289
    %v291 = vsub.f32 1.5, %v290
    %v292 = vmul.f32 %v287, %v291
    %vm293 = vweird.f32 %v260
    %vm294 = vweird.f32 %v287
    %vm295 = vmor %vm293, %vm294
    %v296 = vsel %vm295, %v287, %v292
    %v297 = vrsqrt.pop %v262
    %v298 = vmul.f32 %v297, %v262
    %v299 = vmul.f32 %v298, %v297
    %v300 = vmul.f32 0.5, %v299
    %v301 = vsub.f32 1.5, %v300
    %v302 = vmul.f32 %v297, %v301
    %vm303 = vweird.f32 %v262
    %vm304 = vweird.f32 %v297
    %vm305 = vmor %vm303, %vm304
    %v306 = vsel %vm305, %v297, %v302
    %v307 = vrsqrt.pop %v264
    %v308 = vmul.f32 %v307, %v264
    %v309 = vmul.f32 %v308, %v307
    %v310 = vmul.f32 0.5, %v309
    %v311 = vsub.f32 1.5, %v310
    %v312 = vmul.f32 %v307, %v311
    %vm313 = vweird.f32 %v264
    %vm314 = vweird.f32 %v307
    %vm315 = vmor %vm313, %vm314
    %v316 = vsel %vm315, %v307, %v312
    %v317 = vrsqrt.pop %v266
    %v318 = vmul.f32 %v317, %v266
    %v319 = vmul.f32 %v318, %v317
    %v320 = vmul.f32 0.5, %v319
    %v321 = vsub.f32 1.5, %v320
    %v322 = vmul.f32 %v317, %v321
    %vm323 = vweird.f32 %v266
    %vm324 = vweird.f32 %v317
    %vm325 = vmor %vm323, %vm324
    %v326 = vsel %vm325, %v317, %v322
    %v327 = vrsqrt.pop %v268
    %v328 = vmul.f32 %v327, %v268
    %v329 = vmul.f32 %v328, %v327
    %v330 = vmul.f32 0.5, %v329
    %v331 = vsub.f32 1.5, %v330
    %v332 = vmul.f32 %v327, %v331
    %vm333 = vweird.f32 %v268
    %vm334 = vweird.f32 %v327
    %vm335 = vmor %vm333, %vm334
    %v336 = vsel %vm335, %v327, %v332
    %v337 = vrsqrt.pop %v270
    %v338 = vmul.f32 %v337, %v270
    %v339 = vmul.f32 %v338, %v337
    %v340 = vmul.f32 0.5, %v339
    %v341 = vsub.f32 1.5, %v340
    %v342 = vmul.f32 %v337, %v341
    %vm343 = vweird.f32 %v270
    %vm344 = vweird.f32 %v337
    %vm345 = vmor %vm343, %vm344
    %v346 = vsel %vm345, %v337, %v342
    %v347 = vrsqrt.pop %v272
    %v348 = vmul.f32 %v347, %v272
    %v349 = vmul.f32 %v348, %v347
    %v350 = vmul.f32 0.5, %v349
    %v351 = vsub.f32 1.5, %v350
    %v352 = vmul.f32 %v347, %v351
    %vm353 = vweird.f32 %v272
    %vm354 = vweird.f32 %v347
    %vm355 = vmor %vm353, %vm354
    %v356 = vsel %vm355, %v347, %v352
    %v357 = vrsqrt.pop %v274
    %v358 = vmul.f32 %v357, %v274
    %v359 = vmul.f32 %v358, %v357
    %v360 = vmul.f32 0.5, %v359
    %v361 = vsub.f32 1.5, %v360
    %v362 = vmul.f32 %v357, %v361
    %vm363 = vweird.f32 %v274
    %vm364 = vweird.f32 %v357
    %vm365 = vmor %vm363, %vm364
    %v366 = vsel %vm365, %v357, %v362
    %v367 = vrsqrt.pop %v276
    %v368 = vmul.f32 %v367, %v276
    %v369 = vmul.f32 %v368, %v367
    %v370 = vmul.f32 0.5, %v369
    %v371 = vsub.f32 1.5, %v370
    %v372 = vmul.f32 %v367, %v371
    %vm373 = vweird.f32 %v276
    %vm374 = vweird.f32 %v367
    %vm375 = vmor %vm373, %vm374
    %v376 = vsel %vm375, %v367, %v372
    %v377 = vrsqrt.pop %v278
    %v378 = vmul.f32 %v377, %v278
    %v379 = vmul.f32 %v378, %v377
    %v380 = vmul.f32 0.5, %v379
    %v381 = vsub.f32 1.5, %v380
    %v382 = vmul.f32 %v377, %v381
    %vm383 = vweird.f32 %v278
    %vm384 = vweird.f32 %v377
    %vm385 = vmor %vm383, %vm384
    %v386 = vsel %vm385, %v377, %v382
    %v387 = vrsqrt.pop %v280
    %v388 = vmul.f32 %v387, %v280
    %v389 = vmul.f32 %v388, %v387
    %v390 = vmul.f32 0.5, %v389
    %v391 = vsub.f32 1.5, %v390
    %v392 = vmul.f32 %v387, %v391
    %vm393 = vweird.f32 %v280
    %vm394 = vweird.f32 %v387
    %vm395 = vmor %vm393, %vm394
    %v396 = vsel %vm395, %v387, %v392
    %v397 = vrsqrt.pop %v282
    %v398 = vmul.f32 %v397, %v282
    %v399 = vmul.f32 %v398, %v397
    %v400 = vmul.f32 0.5, %v399
    %v401 = vsub.f32 1.5, %v400
    %v402 = vmul.f32 %v397, %v401
    %vm403 = vweird.f32 %v282
    %vm404 = vweird.f32 %v397
    %vm405 = vmor %vm403, %vm404
    %v406 = vsel %vm405, %v397, %v402
    %v407 = vrsqrt.pop %v286
    %v408 = vmul.f32 %v407, %v286
    %v409 = vmul.f32 %v408, %v407
    %v410 = vmul.f32 0.5, %v409
    %v411 = vsub.f32 1.5, %v410
    %v412 = vmul.f32 %v407, %v411
    %vm413 = vweird.f32 %v286
    %vm414 = vweird.f32 %v407
    %vm415 = vmor %vm413, %vm414
    %v416 = vsel %vm415, %v407, %v412
    %v417 = vmul.f32 %v208, %v296
    %v418 = vmul.f32 %v211, %v306
    %v419 = vmul.f32 %v214, %v316
    %v420 = vmul.f32 %v217, %v326
    %v421 = vmul.f32 %v220, %v336
    %v422 = vmul.f32 %v223, %v346
    %v423 = vmul.f32 %v226, %v356
    %v424 = vmul.f32 %v229, %v366
    %v425 = vmul.f32 %v232, %v376
    %v426 = vmul.f32 %v235, %v386
    %v427 = vmul.f32 %v238, %v396
    %v428 = vmul.f32 %v241, %v406
    %v429 = vmul.f32 %v244, %v416
    %430 = vst [vmem:[#allocation8] sm:$0xff] %v417
    %431 = vst [vmem:[#allocation8 + $0x8] sm:$0xff] %v418
    %432 = vst [vmem:[#allocation8 + $0x10] sm:$0xff] %v419
    %433 = vst [vmem:[#allocation8 + $0x18] sm:$0xff] %v420
    %434 = vst [vmem:[#allocation8 + $0x20] sm:$0xff] %v421
    %435 = vst [vmem:[#allocation8 + $0x28] sm:$0xff] %v422
    %436 = vst [vmem:[#allocation8 + $0x30] sm:$0xff] %v423
    %437 = vst [vmem:[#allocation8 + $0x38] sm:$0xff] %v424
    %438 = vst [vmem:[#allocation8 + $0x40] sm:$0xff] %v425
    %439 = vst [vmem:[#allocation8 + $0x48] sm:$0xff] %v426
    %440 = vst [vmem:[#allocation8 + $0x50] sm:$0xff] %v427
    %441 = vst [vmem:[#allocation8 + $0x58] sm:$0xff] %v428
    %442 = vst [vmem:[#allocation8 + $0x60] sm:$0xf] %v429
    // Predicated region
    $region34: #{tpu_custom_call.1} parent=1 // pred_check
      _
    $region35: #{tpu_custom_call.1} parent=1 // pred_check_branch
      %444 = sbr.rel (0) target = $region37
    $region36: #{tpu_custom_call.1} parent=1 // pred_region
      %446 = vsyncadd [#allocation4], 0
      %s447 = sshll.u32 [#allocation8], 4
      %s448 = int_to_ptr.vmem [resolvable:$true] %s447
      %s449 = sshll.u32 %s5, 4
      %s450 = int_to_ptr.hbm [resolvable:$true] %s449
      %455 = dma.vmem_to_hbm [thread:$0]  %s448, 1664, %s450, [#allocation4], 128, 128, 8
    $region37: #{tpu_custom_call.1} parent=1 // pred_fallthru
      _
    // Predicated region
    $region38: #{tpu_custom_call.1} parent=1 // pred_check
      _
    $region39: #{tpu_custom_call.1} parent=1 // pred_check_branch
      %457 = sbr.rel (0) target = $region41
    $region40: #{tpu_custom_call.1} parent=1 // pred_region
      %459 = dma.done [#allocation4], 1664
    $region41: #{tpu_custom_call.1} parent=1 // pred_fallthru
      _
    %460 = vsyncpa [#allocation3], 1
    %461 = vsyncpa [#allocation6], 1
    %462 = vsyncpa [#allocation4], 1

</llo_original>
